<compile_context>
chip_gen: v7x
topology: tpu7x:2x2x1
jax: 0.10.0
libtpu: 0.0.40
codegen_flags: <defaults>
</compile_context>

<pallas_src>
import functools

import jax
import jax.numpy as jnp
from jax.experimental import pallas as pl
from jax.experimental.pallas import tpu as pltpu


def _round_up(n, m):
    return ((n + m - 1) // m) * m


def _vmem_capacity_bytes():
    try:
        return int(pltpu.get_tpu_info().vmem_capacity_bytes)
    except Exception:
        return 64 << 20  # conservative: most constrained generation (v7x)


def _pick_layer_block(nlayers, per_layer_bytes, weight_budget,
                      target_bytes=2 << 20):
    """Pick L_blk (a divisor of nlayers) so the per-step weight DMA reaches
    ~target_bytes while the double-buffered block stays within weight_budget."""
    divisors = [d for d in range(1, nlayers + 1) if nlayers % d == 0]
    fitting = [d for d in divisors if 2 * d * per_layer_bytes <= weight_budget]
    if not fitting:
        # TODO(synk): tile weights along out-features (256-wide on v6e/v7x)
        # once a single (Hp, Hp) layer no longer double-buffers in VMEM.
        return 1
    for d in fitting:  # smallest divisor that reaches the DMA-size target
        if d * per_layer_bytes >= target_bytes:
            return d
    return fitting[-1]  # small stack: take as many layers per step as we can


def _weight_block_spec(l_blk, hp, n_buf):
    idx = lambda b, l: (l, 0, 0)
    if n_buf > 2:
        try:
            return pl.BlockSpec((l_blk, hp, hp), idx,
                                pipeline_mode=pl.Buffered(n_buf))
        except TypeError:  # older jax without pipeline_mode: default buffering
            pass
    return pl.BlockSpec((l_blk, hp, hp), idx)


# --------------------------------------------------------------------------
# Fused path: whole bf16 weight stack resident in VMEM, unrolled layer loop.
# --------------------------------------------------------------------------
def _toy_fused_kernel(x_ref, w_ref, o_ref):
    # x_ref: (Bp, Hp) f32, w_ref: (nlayers, Hp, Hp) bf16 ([in, out] layout).
    nlayers = w_ref.shape[0]
    acc = x_ref[...].astype(jnp.bfloat16)   # bf16 operand, f32 accumulate
    for l in range(nlayers):                # static unroll; full LLO visibility
        y = jnp.dot(acc, w_ref[l], preferred_element_type=jnp.float32)
        acc = y.astype(jnp.bfloat16) if l + 1 < nlayers else y
    o_ref[...] = acc.astype(o_ref.dtype)


# --------------------------------------------------------------------------
# Streamed path: grid = (batch tiles [parallel], layer blocks [arbitrary]).
# One (L_blk, Hp, Hp) bf16 weight block is DMA'd per step; the f32 output
# block (constant block index along the layer axis) is the resident
# accumulator — correct only while the layer axis stays "arbitrary".
# --------------------------------------------------------------------------
def _toy_streamed_kernel(x_ref, w_ref, o_ref):
    @pl.when(pl.program_id(1) == 0)
    def _():
        o_ref[...] = x_ref[...]            # seed accumulator with x

    acc = o_ref[...]
    for l in range(w_ref.shape[0]):        # static unroll over the layer block
        acc = jnp.dot(acc.astype(jnp.bfloat16), w_ref[l],
                      preferred_element_type=jnp.float32)
    o_ref[...] = acc


# --------------------------------------------------------------------------
# One-time (init-time) weight preprocessing.  Do NOT call per forward step.
# --------------------------------------------------------------------------
def prepare_toy_model_weights(weights):
    """weights: [nlayers, H, H] in PyTorch (out, in) layout.
    Returns (w_p, H): bf16 [nlayers, Hp, Hp] in (in, out) layout, lane-dense."""
    weights = jnp.asarray(weights, jnp.float32)
    nlayers, H, H2 = weights.shape
    assert H == H2, "ToyModel layers are square"
    Hp = _round_up(H, 128)
    w_t = jnp.swapaxes(weights, 1, 2).astype(jnp.bfloat16)  # (out,in)->(in,out)
    if Hp != H:
        w_p = jnp.zeros((nlayers, Hp, Hp), jnp.bfloat16).at[:, :H, :H].set(w_t)
    else:
        w_p = w_t
    return jax.device_put(w_p), H


@functools.partial(jax.jit, static_argnames=("hidden_size", "path"))
def toy_model_forward(x, w_p, *, hidden_size, path=None):
    """x: [B, H]; w_p: cached output of prepare_toy_model_weights()."""
    nlayers, Hp, _ = w_p.shape
    H = hidden_size
    B = x.shape[0]
    Bp = _round_up(B, 16)   # bf16 sublane-packs 16 rows per vreg

    # Fresh, zero-padded f32 activation buffer (exact for this matmul chain).
    x_p = jnp.zeros((Bp, Hp), jnp.float32).at[:B, :H].set(
        x.astype(jnp.float32))

    act_bytes = Bp * Hp * 4
    per_layer_bytes = Hp * Hp * 2
    w_stack_bytes = nlayers * per_layer_bytes
    vmem_cap = _vmem_capacity_bytes()

    use_fused = (w_stack_bytes + 3 * act_bytes <= (4 << 20)) and nlayers <= 16
    if path is not None:
        use_fused = (path == "fused")

    if use_fused:
        fused_needed = w_stack_bytes + 3 * act_bytes + (2 << 20)
        fused_params = None
        if fused_needed > (16 << 20):  # exceed the smallest default scoped VMEM
            fused_params = pltpu.CompilerParams(
                vmem_limit_bytes=int(min(fused_needed, vmem_cap - (4 << 20))))
        out_p = pl.pallas_call(
            _toy_fused_kernel,
            out_shape=jax.ShapeDtypeStruct((Bp, Hp), jnp.float32),
            in_specs=[
                pl.BlockSpec(memory_space=pltpu.MemorySpace.VMEM),  # x
                pl.BlockSpec(memory_space=pltpu.MemorySpace.VMEM),  # W stack
            ],
            out_specs=pl.BlockSpec(memory_space=pltpu.MemorySpace.VMEM),
            compiler_params=fused_params,
        )(x_p, w_p)
    else:
        budget = (vmem_cap * 3) // 4        # headroom for Mosaic scratch/sems

        # Batch tiling: lets v7x shard the "parallel" axis across its 2 TCs
        # for large B; a single tile at small B.
        if Bp > 256 and Bp % 256 == 0:
            tm = 256
        else:
            tm = Bp

        act_buf_bytes = 4 * tm * Hp * 4     # 2 x-buffers + 2 out-buffers (f32)
        weight_budget = max(budget - act_buf_bytes - (2 << 20), per_layer_bytes)
        L_blk = _pick_layer_block(nlayers, per_layer_bytes, weight_budget)
        blk_bytes = L_blk * per_layer_bytes
        n_w_buf = 3 if (3 * blk_bytes <= weight_budget
                        and blk_bytes <= (4 << 20)) else 2

        needed = n_w_buf * blk_bytes + act_buf_bytes + (2 << 20)
        # Always pass an explicit limit (v5e default scoped VMEM is 16 MiB).
        vmem_limit = int(min(max(needed, 16 << 20), vmem_cap - (4 << 20)))

        out_p = pl.pallas_call(
            _toy_streamed_kernel,
            out_shape=jax.ShapeDtypeStruct((Bp, Hp), jnp.float32),
            grid_spec=pltpu.PrefetchScalarGridSpec(
                num_scalar_prefetch=0,
                grid=(Bp // tm, nlayers // L_blk),
                in_specs=[
                    # activation tile, read once per batch tile
                    pl.BlockSpec((tm, Hp), lambda b, l: (b, 0)),
                    # L_blk layers of bf16 weights per grid step
                    _weight_block_spec(L_blk, Hp, n_w_buf),
                ],
                out_specs=pl.BlockSpec((tm, Hp), lambda b, l: (b, 0)),
            ),
            input_output_aliases={0: 0},   # x_p buffer donated to the output
            compiler_params=pltpu.CompilerParams(
                dimension_semantics=("parallel", "arbitrary"),
                vmem_limit_bytes=vmem_limit,
            ),
        )(x_p, w_p)

    return out_p[:B, :H].astype(x.dtype)


def _init_weights(key, nlayers, hidden_size, weight_sharing=False):
    """Deterministic synthetic init (Kaiming-uniform-like bounds of nn.Linear)."""
    bound = 1.0 / jnp.sqrt(hidden_size)
    keys = jax.random.split(key, nlayers)
    ws = [
        jax.random.uniform(k, (hidden_size, hidden_size), jnp.float32,
                           -bound, bound)
        for k in keys
    ]
    if weight_sharing and nlayers > 1:
        ws[-1] = ws[0]
    return jnp.stack(ws, axis=0)  # [nlayers, H, H] PyTorch (out, in) layout


if __name__ == "__main__":
    nlayers = 4
    hidden_size = 32
    batch = 8

    key = jax.random.PRNGKey(0)
    kx, kw = jax.random.split(key)
    x = jax.random.normal(kx, (batch, hidden_size), jnp.float32)
    weights = _init_weights(kw, nlayers, hidden_size, weight_sharing=False)

    # One-time init cost; cached and reused for every forward call.
    w_prepared, H = prepare_toy_model_weights(weights)

    out = jax.block_until_ready(
        toy_model_forward(x, w_prepared, hidden_size=H))
    assert out.shape == (batch, hidden_size)

    # Also exercise the streamed (layer-blocked, accumulator) path at the same
    # small shapes to validate both code paths.
    out_streamed = jax.block_until_ready(
        toy_model_forward(x, w_prepared, hidden_size=H, path="streamed"))
    assert out_streamed.shape == (batch, hidden_size)
    assert jnp.allclose(out, out_streamed, atol=1e-5, rtol=1e-5), \
        "fused vs streamed path mismatch"

    # Reference with the same precision model as the kernel
    # (bf16 operands, f32 accumulation, f32 carried activation).
    ref_bf16 = x.astype(jnp.float32)
    for l in range(nlayers):
        ref_bf16 = jnp.dot(ref_bf16.astype(jnp.bfloat16),
                           weights[l].T.astype(jnp.bfloat16),
                           preferred_element_type=jnp.float32)
    assert jnp.allclose(out, ref_bf16, atol=1e-3, rtol=1e-3), \
        "mismatch vs bf16-matched reference"

    # Full-f32 module reference (loose tolerance: documented bf16 weight cast).
    ref_f32 = x
    for l in range(nlayers):
        ref_f32 = ref_f32 @ weights[l].T
    assert jnp.allclose(out, ref_f32, atol=5e-2, rtol=5e-2), \
        "mismatch vs f32 reference"

    print("KERNEL_OK")
</pallas_src>

<mosaic_0001>
module attributes {stable_mosaic.version = 11 : i64} {
  func.func @_toy_fused_kernel(%arg0: memref<16x128xf32, #tpu.memory_space<vmem>>, %arg1: memref<4x128x128xbf16, #tpu.memory_space<vmem>>, %arg2: memref<16x128xf32, #tpu.memory_space<vmem>>) attributes {dimension_semantics = [], scalar_prefetch = 0 : i64, scratch_operands = 0 : i64, tpu.core_type = #tpu.core_type<tc>} {
    %c0 = arith.constant 0 : index
    %c0_0 = arith.constant 0 : index
    %0 = vector.load %arg0[%c0, %c0_0] : memref<16x128xf32, #tpu.memory_space<vmem>>, vector<16x128xf32>
    %1 = arith.truncf %0 : vector<16x128xf32> to vector<16x128xbf16>
    %c0_1 = arith.constant 0 : index
    %c0_2 = arith.constant 0 : index
    %c0_3 = arith.constant 0 : index
    %2 = vector.load %arg1[%c0_1, %c0_2, %c0_3] : memref<4x128x128xbf16, #tpu.memory_space<vmem>>, vector<1x128x128xbf16>
    %3 = vector.shape_cast %2 : vector<1x128x128xbf16> to vector<128x128xbf16>
    %cst = arith.constant dense<0.000000e+00> : vector<16x128xf32>
    %4 = tpu.matmul %1, %3, %cst {dimension_numbers = #tpu.dot_dimension_numbers<[1], [0], [0], [1], [0, 0, 1, 1], [], []>} : vector<16x128xbf16>, vector<128x128xbf16>, vector<16x128xf32> -> vector<16x128xf32>
    %5 = arith.truncf %4 : vector<16x128xf32> to vector<16x128xbf16>
    %c1 = arith.constant 1 : index
    %c0_4 = arith.constant 0 : index
    %c0_5 = arith.constant 0 : index
    %6 = vector.load %arg1[%c1, %c0_4, %c0_5] : memref<4x128x128xbf16, #tpu.memory_space<vmem>>, vector<1x128x128xbf16>
    %7 = vector.shape_cast %6 : vector<1x128x128xbf16> to vector<128x128xbf16>
    %cst_6 = arith.constant dense<0.000000e+00> : vector<16x128xf32>
    %8 = tpu.matmul %5, %7, %cst_6 {dimension_numbers = #tpu.dot_dimension_numbers<[1], [0], [0], [1], [0, 0, 1, 1], [], []>} : vector<16x128xbf16>, vector<128x128xbf16>, vector<16x128xf32> -> vector<16x128xf32>
    %9 = arith.truncf %8 : vector<16x128xf32> to vector<16x128xbf16>
    %c2 = arith.constant 2 : index
    %c0_7 = arith.constant 0 : index
    %c0_8 = arith.constant 0 : index
    %10 = vector.load %arg1[%c2, %c0_7, %c0_8] : memref<4x128x128xbf16, #tpu.memory_space<vmem>>, vector<1x128x128xbf16>
    %11 = vector.shape_cast %10 : vector<1x128x128xbf16> to vector<128x128xbf16>
    %cst_9 = arith.constant dense<0.000000e+00> : vector<16x128xf32>
    %12 = tpu.matmul %9, %11, %cst_9 {dimension_numbers = #tpu.dot_dimension_numbers<[1], [0], [0], [1], [0, 0, 1, 1], [], []>} : vector<16x128xbf16>, vector<128x128xbf16>, vector<16x128xf32> -> vector<16x128xf32>
    %13 = arith.truncf %12 : vector<16x128xf32> to vector<16x128xbf16>
    %c3 = arith.constant 3 : index
    %c0_10 = arith.constant 0 : index
    %c0_11 = arith.constant 0 : index
    %14 = vector.load %arg1[%c3, %c0_10, %c0_11] : memref<4x128x128xbf16, #tpu.memory_space<vmem>>, vector<1x128x128xbf16>
    %15 = vector.shape_cast %14 : vector<1x128x128xbf16> to vector<128x128xbf16>
    %cst_12 = arith.constant dense<0.000000e+00> : vector<16x128xf32>
    %16 = tpu.matmul %13, %15, %cst_12 {dimension_numbers = #tpu.dot_dimension_numbers<[1], [0], [0], [1], [0, 0, 1, 1], [], []>} : vector<16x128xbf16>, vector<128x128xbf16>, vector<16x128xf32> -> vector<16x128xf32>
    %c0_13 = arith.constant 0 : index
    %c0_14 = arith.constant 0 : index
    %17 = vector.load %arg2[%c0_13, %c0_14] : memref<16x128xf32, #tpu.memory_space<vmem>>, vector<16x128xf32>
    tpu.vector_store %arg2[%c0_13, %c0_14], %16 {strides = array<i32>} : memref<16x128xf32, #tpu.memory_space<vmem>>, vector<16x128xf32>,
    return
  }
}

</mosaic_0001>

<llo_original>
// kernel: toy_model_forward.1
$region0: #{toy_model_forward.1}
  #allocation0 [shape = 'u32[]', space=smem, size = 0x4, offset = 0x4, fixed_abs, tag = 'smem constant byte address 0x4 - core index']
  #allocation1 [shape = 'u32[144,128]{1,0:T(1,128)}', space=vmem, size = 0x12000, scoped, tag = 'internal scratch']
  %s0 = inlined_call_operand.vmem [shape: f32[16,128], index: 0, kind: input, shape index: {}]
  %s1 = inlined_call_operand.hbm [shape: bf16[4,128,128], index: 1, kind: input, shape index: {}]
  %s2 = inlined_call_operand.vmem [shape: f32[16,128], index: 2, kind: output, shape index: {}]
  %s3 = sld [smem:[#allocation0]]
  $region22: #{toy_model_forward.1} parent=0
    _
  %s5 = ssub.s32 1, %s3
  %s6 = scalar_select 0, %s5, %s3
  $region1: #{toy_model_forward.1} parent=0
    #allocation2 [shape = 'u8[131072]{0}', space=vmem, size = 0x20000, scoped, tag = 'input window, operand 1, single buffered']
    #allocation3 [shape = 's32[1]{0}', space=sflag, size = 0x4, scoped, tag = 'scoped memory for toy_model_forward.1']
    %7 = vsyncpa [#allocation3], 0
    // Predicated region
    $region2: #{toy_model_forward.1} parent=1 // pred_check
      _
    $region3: #{toy_model_forward.1} parent=1 // pred_check_branch
      %9 = sbr.rel (0) target = $region5
    $region4: #{toy_model_forward.1} parent=1 // pred_region
      _
    $region5: #{toy_model_forward.1} parent=1 // pred_fallthru
      _
    // Predicated region
    $region6: #{toy_model_forward.1} parent=1 // pred_check
      _
    $region7: #{toy_model_forward.1} parent=1 // pred_check_branch
      %11 = sbr.rel (0) target = $region9
    $region8: #{toy_model_forward.1} parent=1 // pred_region
      %s13 = ssub.s32 4096, 4096
      %14 = vsyncadd [#allocation3], %s13
      %s15 = sshll.u32 [#allocation2], 4
      %s16 = int_to_ptr.vmem [resolvable:$true] %s15
      %21 = dma.hbm_to_vmem [thread:$0]  %s1, 4096, %s16, [#allocation3], 64, 64, 4
    $region9: #{toy_model_forward.1} parent=1 // pred_fallthru
      _
    // Predicated region
    $region10: #{toy_model_forward.1} parent=1 // pred_check
      _
    $region11: #{toy_model_forward.1} parent=1 // pred_check_branch
      %23 = sbr.rel (0) target = $region13
    $region12: #{toy_model_forward.1} parent=1 // pred_region
      %24 = dma.done [#allocation3], 4096
    $region13: #{toy_model_forward.1} parent=1 // pred_fallthru
      _
    %v26 = vld [vmem:[%s0] sm:$0xff]
    %v27 = vld [vmem:[%s0 + $0x8] sm:$0xff]
    %v28 = vpack.c.bf16 %v27, %v26
    %v29 = vld [vmem:[#allocation2] sm:$0xf]
    %v30 = vld [vmem:[#allocation2 + $0x4] sm:$0xf]
    %v31 = vld [vmem:[#allocation2 + $0x8] sm:$0xf]
    %v32 = vld [vmem:[#allocation2 + $0xc] sm:$0xf]
    %v33 = vld [vmem:[#allocation2 + $0x10] sm:$0xf]
    %v34 = vld [vmem:[#allocation2 + $0x14] sm:$0xf]
    %v35 = vld [vmem:[#allocation2 + $0x18] sm:$0xf]
    %v36 = vld [vmem:[#allocation2 + $0x1c] sm:$0xf]
    %v37 = vld [vmem:[#allocation2 + $0x20] sm:$0xf]
    %v38 = vld [vmem:[#allocation2 + $0x24] sm:$0xf]
    %v39 = vld [vmem:[#allocation2 + $0x28] sm:$0xf]
    %v40 = vld [vmem:[#allocation2 + $0x2c] sm:$0xf]
    %v41 = vld [vmem:[#allocation2 + $0x30] sm:$0xf]
    %v42 = vld [vmem:[#allocation2 + $0x34] sm:$0xf]
    %v43 = vld [vmem:[#allocation2 + $0x38] sm:$0xf]
    %v44 = vld [vmem:[#allocation2 + $0x3c] sm:$0xf]
    %v61 = vunpack.c.l.b16 %v29
    %v62 = vunpack.c.l.b16 %v30
    %v63 = vunpack.c.l.b16 %v31
    %v64 = vunpack.c.l.b16 %v32
    %v65 = vunpack.c.l.b16 %v33
    %v66 = vunpack.c.l.b16 %v34
    %v67 = vunpack.c.l.b16 %v35
    %v68 = vunpack.c.l.b16 %v36
    %v69 = vunpack.c.l.b16 %v37
    %v70 = vunpack.c.l.b16 %v38
    %v71 = vunpack.c.l.b16 %v39
    %v72 = vunpack.c.l.b16 %v40
    %v73 = vunpack.c.l.b16 %v41
    %v74 = vunpack.c.l.b16 %v42
    %v75 = vunpack.c.l.b16 %v43
    %v76 = vunpack.c.l.b16 %v44
    %v77 = vpack.c.b16 %v62, %v61
    %v78 = vpack.c.b16 %v64, %v63
    %v79 = vpack.c.b16 %v66, %v65
    %v80 = vpack.c.b16 %v68, %v67
    %v81 = vpack.c.b16 %v70, %v69
    %v82 = vpack.c.b16 %v72, %v71
    %v83 = vpack.c.b16 %v74, %v73
    %v84 = vpack.c.b16 %v76, %v75
    %93 = vmatprep.subr.bf16.mxu0 0
    %94 = vmatpush1.bf16.msra.mxu0 %v77
    %95 = vmatprep.subr.bf16.mxu0 0
    %96 = vmatpush1.bf16.msra.mxu0 %v78
    %97 = vmatprep.subr.bf16.mxu0 0
    %98 = vmatpush1.bf16.msra.mxu0 %v79
    %99 = vmatprep.subr.bf16.mxu0 0
    %100 = vmatpush1.bf16.msra.mxu0 %v80
    %101 = vmatprep.subr.bf16.mxu0 0
    %102 = vmatpush1.bf16.msra.mxu0 %v81
    %103 = vmatprep.subr.bf16.mxu0 0
    %104 = vmatpush1.bf16.msra.mxu0 %v82
    %105 = vmatprep.subr.bf16.mxu0 0
    %106 = vmatpush1.bf16.msra.mxu0 %v83
    %107 = vmatprep.subr.bf16.mxu0 0
    %108 = vmatpush1.bf16.msra.mxu0 %v84
    %109 = vmatprep.subr.bf16.mxu0 0
    %110 = vmatpush1.bf16.msra.mxu0 0
    %111 = vmatprep.subr.bf16.mxu0 0
    %112 = vmatpush1.bf16.msra.mxu0 0
    %113 = vmatprep.subr.bf16.mxu0 0
    %114 = vmatpush1.bf16.msra.mxu0 0
    %115 = vmatprep.subr.bf16.mxu0 0
    %116 = vmatpush1.bf16.msra.mxu0 0
    %117 = vmatprep.subr.bf16.mxu0 0
    %118 = vmatpush1.bf16.msra.mxu0 0
    %119 = vmatprep.subr.bf16.mxu0 0
    %120 = vmatpush1.bf16.msra.mxu0 0
    %121 = vmatprep.subr.bf16.mxu0 0
    %122 = vmatpush1.bf16.msra.mxu0 0
    %123 = vmatprep.subr.bf16.mxu0 0
    %124 = vmatpush1.bf16.msra.mxu0 0
    %125 = vmatprep.mubr.bf16.mxu0 0
    %126 = vmatmul.mubr.bf16.gmra.mrb[0].mxu0 %v28
    %v127 = vpop.f32.mrb[0].mxu0
    %v128 = vadd.f32 0.0, %v127
    %v129 = vpop.f32.mrb[0].mxu0
    %v130 = vpop.f32.mrb[0].mxu0
    %v131 = vadd.f32 0.0, %v130
    %v132 = vpop.f32.mrb[0].mxu0
    %133 = vdwg.mxu0
    %v134 = vpack.c.bf16 %v131, %v128
    %s135 = scalar_lea.vmem [#allocation2], 64
    %v136 = vld [vmem:[%s135] sm:$0xf]
    %v137 = vld [vmem:[%s135 + $0x4] sm:$0xf]
    %v138 = vld [vmem:[%s135 + $0x8] sm:$0xf]
    %v139 = vld [vmem:[%s135 + $0xc] sm:$0xf]
    %v140 = vld [vmem:[%s135 + $0x10] sm:$0xf]
    %v141 = vld [vmem:[%s135 + $0x14] sm:$0xf]
    %v142 = vld [vmem:[%s135 + $0x18] sm:$0xf]
    %v143 = vld [vmem:[%s135 + $0x1c] sm:$0xf]
    %v144 = vld [vmem:[%s135 + $0x20] sm:$0xf]
    %v145 = vld [vmem:[%s135 + $0x24] sm:$0xf]
    %v146 = vld [vmem:[%s135 + $0x28] sm:$0xf]
    %v147 = vld [vmem:[%s135 + $0x2c] sm:$0xf]
    %v148 = vld [vmem:[%s135 + $0x30] sm:$0xf]
    %v149 = vld [vmem:[%s135 + $0x34] sm:$0xf]
    %v150 = vld [vmem:[%s135 + $0x38] sm:$0xf]
    %v151 = vld [vmem:[%s135 + $0x3c] sm:$0xf]
    %v168 = vunpack.c.l.b16 %v136
    %v169 = vunpack.c.l.b16 %v137
    %v170 = vunpack.c.l.b16 %v138
    %v171 = vunpack.c.l.b16 %v139
    %v172 = vunpack.c.l.b16 %v140
    %v173 = vunpack.c.l.b16 %v141
    %v174 = vunpack.c.l.b16 %v142
    %v175 = vunpack.c.l.b16 %v143
    %v176 = vunpack.c.l.b16 %v144
    %v177 = vunpack.c.l.b16 %v145
    %v178 = vunpack.c.l.b16 %v146
    %v179 = vunpack.c.l.b16 %v147
    %v180 = vunpack.c.l.b16 %v148
    %v181 = vunpack.c.l.b16 %v149
    %v182 = vunpack.c.l.b16 %v150
    %v183 = vunpack.c.l.b16 %v151
    %v184 = vpack.c.b16 %v169, %v168
    %v185 = vpack.c.b16 %v171, %v170
    %v186 = vpack.c.b16 %v173, %v172
    %v187 = vpack.c.b16 %v175, %v174
    %v188 = vpack.c.b16 %v177, %v176
    %v189 = vpack.c.b16 %v179, %v178
    %v190 = vpack.c.b16 %v181, %v180
    %v191 = vpack.c.b16 %v183, %v182
    %200 = vmatprep.subr.bf16.mxu0 0
    %201 = vmatpush1.bf16.msra.mxu0 %v184
    %202 = vmatprep.subr.bf16.mxu0 0
    %203 = vmatpush1.bf16.msra.mxu0 %v185
    %204 = vmatprep.subr.bf16.mxu0 0
    %205 = vmatpush1.bf16.msra.mxu0 %v186
    %206 = vmatprep.subr.bf16.mxu0 0
    %207 = vmatpush1.bf16.msra.mxu0 %v187
    %208 = vmatprep.subr.bf16.mxu0 0
    %209 = vmatpush1.bf16.msra.mxu0 %v188
    %210 = vmatprep.subr.bf16.mxu0 0
    %211 = vmatpush1.bf16.msra.mxu0 %v189
    %212 = vmatprep.subr.bf16.mxu0 0
    %213 = vmatpush1.bf16.msra.mxu0 %v190
    %214 = vmatprep.subr.bf16.mxu0 0
    %215 = vmatpush1.bf16.msra.mxu0 %v191
    %216 = vmatprep.subr.bf16.mxu0 0
    %217 = vmatpush1.bf16.msra.mxu0 0
    %218 = vmatprep.subr.bf16.mxu0 0
    %219 = vmatpush1.bf16.msra.mxu0 0
    %220 = vmatprep.subr.bf16.mxu0 0
    %221 = vmatpush1.bf16.msra.mxu0 0
    %222 = vmatprep.subr.bf16.mxu0 0
    %223 = vmatpush1.bf16.msra.mxu0 0
    %224 = vmatprep.subr.bf16.mxu0 0
    %225 = vmatpush1.bf16.msra.mxu0 0
    %226 = vmatprep.subr.bf16.mxu0 0
    %227 = vmatpush1.bf16.msra.mxu0 0
    %228 = vmatprep.subr.bf16.mxu0 0
    %229 = vmatpush1.bf16.msra.mxu0 0
    %230 = vmatprep.subr.bf16.mxu0 0
    %231 = vmatpush1.bf16.msra.mxu0 0
    %232 = vmatprep.mubr.bf16.mxu0 0
    %233 = vmatmul.mubr.bf16.gmra.mrb[0].mxu0 %v134
    %v234 = vpop.f32.mrb[0].mxu0
    %v235 = vadd.f32 0.0, %v234
    %v236 = vpop.f32.mrb[0].mxu0
    %v237 = vpop.f32.mrb[0].mxu0
    %v238 = vadd.f32 0.0, %v237
    %v239 = vpop.f32.mrb[0].mxu0
    %240 = vdwg.mxu0
    %v241 = vpack.c.bf16 %v238, %v235
    %s242 = scalar_lea.vmem [#allocation2], 128
    %v243 = vld [vmem:[%s242] sm:$0xf]
    %v244 = vld [vmem:[%s242 + $0x4] sm:$0xf]
    %v245 = vld [vmem:[%s242 + $0x8] sm:$0xf]
    %v246 = vld [vmem:[%s242 + $0xc] sm:$0xf]
    %v247 = vld [vmem:[%s242 + $0x10] sm:$0xf]
    %v248 = vld [vmem:[%s242 + $0x14] sm:$0xf]
    %v249 = vld [vmem:[%s242 + $0x18] sm:$0xf]
    %v250 = vld [vmem:[%s242 + $0x1c] sm:$0xf]
    %v251 = vld [vmem:[%s242 + $0x20] sm:$0xf]
    %v252 = vld [vmem:[%s242 + $0x24] sm:$0xf]
    %v253 = vld [vmem:[%s242 + $0x28] sm:$0xf]
    %v254 = vld [vmem:[%s242 + $0x2c] sm:$0xf]
    %v255 = vld [vmem:[%s242 + $0x30] sm:$0xf]
    %v256 = vld [vmem:[%s242 + $0x34] sm:$0xf]
    %v257 = vld [vmem:[%s242 + $0x38] sm:$0xf]
    %v258 = vld [vmem:[%s242 + $0x3c] sm:$0xf]
    %v275 = vunpack.c.l.b16 %v243
    %v276 = vunpack.c.l.b16 %v244
    %v277 = vunpack.c.l.b16 %v245
    %v278 = vunpack.c.l.b16 %v246
    %v279 = vunpack.c.l.b16 %v247
    %v280 = vunpack.c.l.b16 %v248
    %v281 = vunpack.c.l.b16 %v249
    %v282 = vunpack.c.l.b16 %v250
    %v283 = vunpack.c.l.b16 %v251
    %v284 = vunpack.c.l.b16 %v252
    %v285 = vunpack.c.l.b16 %v253
    %v286 = vunpack.c.l.b16 %v254
    %v287 = vunpack.c.l.b16 %v255
    %v288 = vunpack.c.l.b16 %v256
    %v289 = vunpack.c.l.b16 %v257
    %v290 = vunpack.c.l.b16 %v258
    %v291 = vpack.c.b16 %v276, %v275
    %v292 = vpack.c.b16 %v278, %v277
    %v293 = vpack.c.b16 %v280, %v279
    %v294 = vpack.c.b16 %v282, %v281
    %v295 = vpack.c.b16 %v284, %v283
    %v296 = vpack.c.b16 %v286, %v285
    %v297 = vpack.c.b16 %v288, %v287
    %v298 = vpack.c.b16 %v290, %v289
    %307 = vmatprep.subr.bf16.mxu0 0
    %308 = vmatpush1.bf16.msra.mxu0 %v291
    %309 = vmatprep.subr.bf16.mxu0 0
    %310 = vmatpush1.bf16.msra.mxu0 %v292
    %311 = vmatprep.subr.bf16.mxu0 0
    %312 = vmatpush1.bf16.msra.mxu0 %v293
    %313 = vmatprep.subr.bf16.mxu0 0
    %314 = vmatpush1.bf16.msra.mxu0 %v294
    %315 = vmatprep.subr.bf16.mxu0 0
    %316 = vmatpush1.bf16.msra.mxu0 %v295
    %317 = vmatprep.subr.bf16.mxu0 0
    %318 = vmatpush1.bf16.msra.mxu0 %v296
    %319 = vmatprep.subr.bf16.mxu0 0
    %320 = vmatpush1.bf16.msra.mxu0 %v297
    %321 = vmatprep.subr.bf16.mxu0 0
    %322 = vmatpush1.bf16.msra.mxu0 %v298
    %323 = vmatprep.subr.bf16.mxu0 0
    %324 = vmatpush1.bf16.msra.mxu0 0
    %325 = vmatprep.subr.bf16.mxu0 0
    %326 = vmatpush1.bf16.msra.mxu0 0
    %327 = vmatprep.subr.bf16.mxu0 0
    %328 = vmatpush1.bf16.msra.mxu0 0
    %329 = vmatprep.subr.bf16.mxu0 0
    %330 = vmatpush1.bf16.msra.mxu0 0
    %331 = vmatprep.subr.bf16.mxu0 0
    %332 = vmatpush1.bf16.msra.mxu0 0
    %333 = vmatprep.subr.bf16.mxu0 0
    %334 = vmatpush1.bf16.msra.mxu0 0
    %335 = vmatprep.subr.bf16.mxu0 0
    %336 = vmatpush1.bf16.msra.mxu0 0
    %337 = vmatprep.subr.bf16.mxu0 0
    %338 = vmatpush1.bf16.msra.mxu0 0
    %339 = vmatprep.mubr.bf16.mxu0 0
    %340 = vmatmul.mubr.bf16.gmra.mrb[0].mxu0 %v241
    %v341 = vpop.f32.mrb[0].mxu0
    %v342 = vadd.f32 0.0, %v341
    %v343 = vpop.f32.mrb[0].mxu0
    %v344 = vpop.f32.mrb[0].mxu0
    %v345 = vadd.f32 0.0, %v344
    %v346 = vpop.f32.mrb[0].mxu0
    %347 = vdwg.mxu0
    %v348 = vpack.c.bf16 %v345, %v342
    %s349 = scalar_lea.vmem [#allocation2], 192
    %v350 = vld [vmem:[%s349] sm:$0xf]
    %v351 = vld [vmem:[%s349 + $0x4] sm:$0xf]
    %v352 = vld [vmem:[%s349 + $0x8] sm:$0xf]
    %v353 = vld [vmem:[%s349 + $0xc] sm:$0xf]
    %v354 = vld [vmem:[%s349 + $0x10] sm:$0xf]
    %v355 = vld [vmem:[%s349 + $0x14] sm:$0xf]
    %v356 = vld [vmem:[%s349 + $0x18] sm:$0xf]
    %v357 = vld [vmem:[%s349 + $0x1c] sm:$0xf]
    %v358 = vld [vmem:[%s349 + $0x20] sm:$0xf]
    %v359 = vld [vmem:[%s349 + $0x24] sm:$0xf]
    %v360 = vld [vmem:[%s349 + $0x28] sm:$0xf]
    %v361 = vld [vmem:[%s349 + $0x2c] sm:$0xf]
    %v362 = vld [vmem:[%s349 + $0x30] sm:$0xf]
    %v363 = vld [vmem:[%s349 + $0x34] sm:$0xf]
    %v364 = vld [vmem:[%s349 + $0x38] sm:$0xf]
    %v365 = vld [vmem:[%s349 + $0x3c] sm:$0xf]
    %v382 = vunpack.c.l.b16 %v350
    %v383 = vunpack.c.l.b16 %v351
    %v384 = vunpack.c.l.b16 %v352
    %v385 = vunpack.c.l.b16 %v353
    %v386 = vunpack.c.l.b16 %v354
    %v387 = vunpack.c.l.b16 %v355
    %v388 = vunpack.c.l.b16 %v356
    %v389 = vunpack.c.l.b16 %v357
    %v390 = vunpack.c.l.b16 %v358
    %v391 = vunpack.c.l.b16 %v359
    %v392 = vunpack.c.l.b16 %v360
    %v393 = vunpack.c.l.b16 %v361
    %v394 = vunpack.c.l.b16 %v362
    %v395 = vunpack.c.l.b16 %v363
    %v396 = vunpack.c.l.b16 %v364
    %v397 = vunpack.c.l.b16 %v365
    %v398 = vpack.c.b16 %v383, %v382
    %v399 = vpack.c.b16 %v385, %v384
    %v400 = vpack.c.b16 %v387, %v386
    %v401 = vpack.c.b16 %v389, %v388
    %v402 = vpack.c.b16 %v391, %v390
    %v403 = vpack.c.b16 %v393, %v392
    %v404 = vpack.c.b16 %v395, %v394
    %v405 = vpack.c.b16 %v397, %v396
    %414 = vmatprep.subr.bf16.mxu0 0
    %415 = vmatpush1.bf16.msra.mxu0 %v398
    %416 = vmatprep.subr.bf16.mxu0 0
    %417 = vmatpush1.bf16.msra.mxu0 %v399
    %418 = vmatprep.subr.bf16.mxu0 0
    %419 = vmatpush1.bf16.msra.mxu0 %v400
    %420 = vmatprep.subr.bf16.mxu0 0
    %421 = vmatpush1.bf16.msra.mxu0 %v401
    %422 = vmatprep.subr.bf16.mxu0 0
    %423 = vmatpush1.bf16.msra.mxu0 %v402
    %424 = vmatprep.subr.bf16.mxu0 0
    %425 = vmatpush1.bf16.msra.mxu0 %v403
    %426 = vmatprep.subr.bf16.mxu0 0
    %427 = vmatpush1.bf16.msra.mxu0 %v404
    %428 = vmatprep.subr.bf16.mxu0 0
    %429 = vmatpush1.bf16.msra.mxu0 %v405
    %430 = vmatprep.subr.bf16.mxu0 0
    %431 = vmatpush1.bf16.msra.mxu0 0
    %432 = vmatprep.subr.bf16.mxu0 0
    %433 = vmatpush1.bf16.msra.mxu0 0
    %434 = vmatprep.subr.bf16.mxu0 0
    %435 = vmatpush1.bf16.msra.mxu0 0
    %436 = vmatprep.subr.bf16.mxu0 0
    %437 = vmatpush1.bf16.msra.mxu0 0
    %438 = vmatprep.subr.bf16.mxu0 0
    %439 = vmatpush1.bf16.msra.mxu0 0
    %440 = vmatprep.subr.bf16.mxu0 0
    %441 = vmatpush1.bf16.msra.mxu0 0
    %442 = vmatprep.subr.bf16.mxu0 0
    %443 = vmatpush1.bf16.msra.mxu0 0
    %444 = vmatprep.subr.bf16.mxu0 0
    %445 = vmatpush1.bf16.msra.mxu0 0
    %446 = vmatprep.mubr.bf16.mxu0 0
    %447 = vmatmul.mubr.bf16.gmra.mrb[0].mxu0 %v348
    %v448 = vpop.f32.mrb[0].mxu0
    %v449 = vadd.f32 0.0, %v448
    %v450 = vpop.f32.mrb[0].mxu0
    %v451 = vpop.f32.mrb[0].mxu0
    %v452 = vadd.f32 0.0, %v451
    %v453 = vpop.f32.mrb[0].mxu0
    %454 = vdwg.mxu0
    %455 = vst [vmem:[%s2] sm:$0xff] %v449
    %456 = vst [vmem:[%s2 + $0x8] sm:$0xff] %v452
    // Predicated region
    $region14: #{toy_model_forward.1} parent=1 // pred_check
      _
    $region15: #{toy_model_forward.1} parent=1 // pred_check_branch
      %458 = sbr.rel (0) target = $region17
    $region16: #{toy_model_forward.1} parent=1 // pred_region
      _
    $region17: #{toy_model_forward.1} parent=1 // pred_fallthru
      _
    // Predicated region
    $region18: #{toy_model_forward.1} parent=1 // pred_check
      _
    $region19: #{toy_model_forward.1} parent=1 // pred_check_branch
      %460 = sbr.rel (0) target = $region21
    $region20: #{toy_model_forward.1} parent=1 // pred_region
      _
    $region21: #{toy_model_forward.1} parent=1 // pred_fallthru
      _
    %461 = vsyncpa [#allocation3], 1

</llo_original>
